<compile_context>
chip_gen: v5e
topology: v5e:2x2
jax: 0.10.0
libtpu: 0.0.40
codegen_flags: <defaults>
</compile_context>

<pallas_src>
import functools
from typing import NamedTuple, Optional

import jax
import jax.numpy as jnp
from jax import lax
from jax.experimental import pallas as pl
from jax.experimental.pallas import tpu as pltpu

_SQRT_HALF = 0.7071067811865476


def _round_up(a: int, b: int) -> int:
    return ((a + b - 1) // b) * b


def _pick_tile(extent: int, target: int, align: int) -> int:
    """Largest tile <= target (multiple of `align`) keeping padding <= ~12.5%."""
    full = _round_up(extent, align)
    if full <= target:
        return full
    tile = max(align, (target // align) * align)
    while tile > align and (_round_up(extent, tile) - extent) * 8 > extent:
        tile = max(align, (tile // 2 // align) * align)
    return tile


class GegluConfig(NamedTuple):
    dim_in: int
    dim_out: int
    dim_in_p: int
    dim_out_p: int
    tn: int
    tk: int
    weight_stationary: bool


def _gelu_exact_f32(g):
    # Exact erf-based GELU in float32 (matches torch.nn.functional.gelu default).
    return 0.5 * g * (1.0 + lax.erf(g * jnp.float32(_SQRT_HALF)))


# ---------------------------------------------------------------------------
# Kernels
# ---------------------------------------------------------------------------
def _geglu_ws_kernel(x_ref, w_ref, b_ref, o_ref):
    """Weight-stationary path: single K step, fused-W panel resident across M tiles."""
    tn = o_ref.shape[-1]
    proj = jnp.dot(x_ref[...], w_ref[...], preferred_element_type=jnp.float32)
    proj = proj + b_ref[...]                      # (1, 2tn) f32 bias broadcast
    h = proj[:, :tn]                              # lane-aligned split (tn % 128 == 0)
    g = proj[:, tn:]
    gelu_g = _gelu_exact_f32(g)
    o_ref[...] = h.astype(o_ref.dtype) * gelu_g.astype(o_ref.dtype)


def _geglu_kernel(x_ref, w_ref, b_ref, o_ref, acc_ref):
    """General path: one (tm, tn) output tile; K is the innermost (reduction) axis."""
    k = pl.program_id(2)

    @pl.when(k == 0)
    def _():
        # Bias folded into the accumulator init: saves a (tm, 2tn) f32 temporary and
        # a full-tile VPU add in the epilogue.
        acc_ref[...] = jnp.broadcast_to(b_ref[...], acc_ref.shape)

    acc_ref[...] += jnp.dot(x_ref[...], w_ref[...],
                            preferred_element_type=jnp.float32)

    @pl.when(k == pl.num_programs(2) - 1)
    def _():
        tn = o_ref.shape[-1]
        proj = acc_ref[...]
        h = proj[:, :tn]
        g = proj[:, tn:]
        gelu_g = _gelu_exact_f32(g)
        o_ref[...] = h.astype(o_ref.dtype) * gelu_g.astype(o_ref.dtype)


# ---------------------------------------------------------------------------
# One-time parameter layout prep (keep OUT of the per-step hot path)
# ---------------------------------------------------------------------------
def geglu_prepare(weight, bias, *, tn: int = 512, tk: int = 1024,
                  compute_dtype: Optional[jnp.dtype] = None,
                  ws_panel_bytes: int = 8 * 1024 * 1024):
    """weight: (2*dim_out, dim_in) as in nn.Linear;  bias: (2*dim_out,).

    Returns (w_fused, b_fused, cfg).  w_fused is (dim_in_p, 2*dim_out_p) laid out per
    N-tile as [W_h tile | W_g tile] so the kernel does ONE matmul per tile.
    Set compute_dtype=jnp.bfloat16 to feed the MXU bf16 (f32 accumulation kept).
    """
    two_dout, dim_in = weight.shape
    dim_out = two_dout // 2
    w_dtype = jnp.dtype(compute_dtype) if compute_dtype is not None else weight.dtype
    itemsize = jnp.dtype(w_dtype).itemsize

    tn_eff = _pick_tile(dim_out, tn, 128)
    dim_out_p = _round_up(dim_out, tn_eff)
    grid_n = dim_out_p // tn_eff

    # Weight-stationary when one fused (dim_in_p, 2*tn) panel fits a modest VMEM budget.
    dim_in_ws = _round_up(dim_in, 8)
    weight_stationary = dim_in_ws * 2 * tn_eff * itemsize <= ws_panel_bytes
    if weight_stationary:
        dim_in_p = dim_in_ws
        tk_eff = dim_in_p
    else:
        tk_eff = min(_round_up(tk, 128), _round_up(dim_in, 128))
        dim_in_p = _round_up(dim_in, tk_eff)

    w_h = weight[:dim_out, :].T                    # (dim_in, dim_out)
    w_g = weight[dim_out:, :].T
    pad = ((0, dim_in_p - dim_in), (0, dim_out_p - dim_out))
    w_h = jnp.pad(w_h, pad)
    w_g = jnp.pad(w_g, pad)
    b_h = jnp.pad(bias[:dim_out], (0, dim_out_p - dim_out))
    b_g = jnp.pad(bias[dim_out:], (0, dim_out_p - dim_out))

    # Interleave per N-tile: cols [j*2tn : j*2tn+tn] = W_h tile j, next tn = W_g tile j.
    w_fused = jnp.concatenate(
        [w_h.reshape(dim_in_p, grid_n, tn_eff),
         w_g.reshape(dim_in_p, grid_n, tn_eff)], axis=-1,
    ).reshape(dim_in_p, grid_n * 2 * tn_eff).astype(w_dtype)
    b_fused = jnp.concatenate(
        [b_h.reshape(grid_n, tn_eff),
         b_g.reshape(grid_n, tn_eff)], axis=-1,
    ).reshape(1, grid_n * 2 * tn_eff).astype(jnp.float32)

    cfg = GegluConfig(dim_in=dim_in, dim_out=dim_out,
                      dim_in_p=dim_in_p, dim_out_p=dim_out_p,
                      tn=tn_eff, tk=tk_eff, weight_stationary=weight_stationary)
    return w_fused, b_fused, cfg


def _vmem_limit_bytes(tm, tn, tk, in_bytes, out_bytes, weight_stationary):
    x_t = tm * tk * in_bytes
    w_t = tk * 2 * tn * in_bytes
    b_t = 2 * tn * 4
    o_t = tm * tn * out_bytes
    acc = 0 if weight_stationary else tm * 2 * tn * 4
    total = 2 * (x_t + w_t + b_t + o_t) + acc          # double-buffered in/out + scratch
    # +50% headroom, floor 16 MiB, cap 48 MiB (v7x has only 64 MiB VMEM / TC).
    return int(min(max(total + total // 2 + (4 << 20), 16 << 20), 48 << 20))


# ---------------------------------------------------------------------------
# Public entry point
# ---------------------------------------------------------------------------
@functools.partial(jax.jit, static_argnames=("cfg", "tm_target"))
def geglu(x, w_fused, b_fused, cfg: GegluConfig, *, tm_target: int = 512):
    """x: (B, S, dim_in). Uses pre-arranged params from geglu_prepare()."""
    B, S, dim_in = x.shape
    dim_out, dim_out_p, dim_in_p = cfg.dim_out, cfg.dim_out_p, cfg.dim_in_p
    tn, tk = cfg.tn, cfg.tk

    M = B * S
    tm = _pick_tile(M, tm_target, 8)
    M_p = _round_up(M, tm)

    x2d = x.reshape(M, dim_in)
    if x2d.dtype != w_fused.dtype:                 # bf16 (or other) compute path
        x2d = x2d.astype(w_fused.dtype)
    if M_p != M or dim_in_p != dim_in:             # ragged M / K -> zero-pad
        x2d = jnp.pad(x2d, ((0, M_p - M), (0, dim_in_p - dim_in)))

    grid_m = M_p // tm
    grid_n = dim_out_p // tn
    vmem_limit = _vmem_limit_bytes(tm, tn, tk, x2d.dtype.itemsize,
                                   jnp.dtype(x.dtype).itemsize,
                                   cfg.weight_stationary)

    if cfg.weight_stationary:
        # grid = (N outer, M inner): the fused-W block index is constant along the
        # inner axis, so the (dim_in_p, 2*tn) panel stays resident in VMEM.
        out2d = pl.pallas_call(
            _geglu_ws_kernel,
            out_shape=jax.ShapeDtypeStruct((M_p, dim_out_p), x.dtype),
            grid_spec=pltpu.PrefetchScalarGridSpec(
                num_scalar_prefetch=0,
                grid=(grid_n, grid_m),
                in_specs=[
                    pl.BlockSpec((tm, tk), lambda j, i: (i, 0)),        # x tile
                    pl.BlockSpec((tk, 2 * tn), lambda j, i: (0, j)),    # fused W panel
                    pl.BlockSpec((1, 2 * tn), lambda j, i: (0, j)),     # fused bias
                ],
                out_specs=pl.BlockSpec((tm, tn), lambda j, i: (i, j)),
            ),
            compiler_params=pltpu.CompilerParams(
                dimension_semantics=("parallel", "parallel"),
                vmem_limit_bytes=vmem_limit,
            ),
        )(x2d, w_fused, b_fused)
    else:
        grid_k = dim_in_p // tk
        out2d = pl.pallas_call(
            _geglu_kernel,
            out_shape=jax.ShapeDtypeStruct((M_p, dim_out_p), x.dtype),
            grid_spec=pltpu.PrefetchScalarGridSpec(
                num_scalar_prefetch=0,
                grid=(grid_m, grid_n, grid_k),
                in_specs=[
                    pl.BlockSpec((tm, tk), lambda i, j, k: (i, k)),
                    pl.BlockSpec((tk, 2 * tn), lambda i, j, k: (k, j)),
                    pl.BlockSpec((1, 2 * tn), lambda i, j, k: (0, j)),
                ],
                out_specs=pl.BlockSpec((tm, tn), lambda i, j, k: (i, j)),
                scratch_shapes=[pltpu.VMEM((tm, 2 * tn), jnp.float32)],
            ),
            compiler_params=pltpu.CompilerParams(
                dimension_semantics=("parallel", "parallel", "arbitrary"),
                vmem_limit_bytes=vmem_limit,
            ),
        )(x2d, w_fused, b_fused)

    return out2d[:M, :dim_out].reshape(B, S, dim_out)


# ---------------------------------------------------------------------------
# Pure-JAX reference (matches the PyTorch forward)
# ---------------------------------------------------------------------------
def geglu_ref(x, weight, bias):
    proj = jnp.einsum("bsi,oi->bso", x, weight) + bias
    dim_out = weight.shape[0] // 2
    h, g = proj[..., :dim_out], proj[..., dim_out:]
    g32 = g.astype(jnp.float32)
    gelu = 0.5 * g32 * (1.0 + lax.erf(g32 / jnp.sqrt(2.0)))
    return h * gelu.astype(g.dtype)


if __name__ == "__main__":
    key = jax.random.PRNGKey(0)

    # ---- Test 1: small shapes, weight-stationary path (single K step) ----
    batch, seq, dim_in, dim_out = 2, 8, 32, 32
    k_x, k_w, k_b, key = jax.random.split(key, 4)
    x = jax.random.normal(k_x, (batch, seq, dim_in), dtype=jnp.float32)
    weight = jax.random.normal(k_w, (2 * dim_out, dim_in), dtype=jnp.float32) * 0.05
    bias = jax.random.normal(k_b, (2 * dim_out,), dtype=jnp.float32) * 0.05

    w_fused, b_fused, cfg = geglu_prepare(weight, bias)
    out = jax.block_until_ready(geglu(x, w_fused, b_fused, cfg))
    ref = geglu_ref(x, weight, bias)
    assert out.shape == (batch, seq, dim_out)
    assert jnp.allclose(out, ref, atol=1e-5, rtol=1e-5), "WS path mismatch vs reference"

    # ---- Test 2: force the general tiled-K path (grid_k > 1, acc scratch) ----
    dim_in2, dim_out2 = 256, 256
    k_x2, k_w2, k_b2, key = jax.random.split(key, 4)
    x2 = jax.random.normal(k_x2, (batch, seq, dim_in2), dtype=jnp.float32)
    weight2 = jax.random.normal(k_w2, (2 * dim_out2, dim_in2), dtype=jnp.float32) * 0.05
    bias2 = jax.random.normal(k_b2, (2 * dim_out2,), dtype=jnp.float32) * 0.05

    w_fused2, b_fused2, cfg2 = geglu_prepare(weight2, bias2, tk=128, ws_panel_bytes=0)
    assert not cfg2.weight_stationary and cfg2.dim_in_p // cfg2.tk == 2
    out2 = jax.block_until_ready(geglu(x2, w_fused2, b_fused2, cfg2))
    ref2 = geglu_ref(x2, weight2, bias2)
    assert out2.shape == (batch, seq, dim_out2)
    # Looser tolerance: different K-blocking under the default (bf16-pass) MXU precision.
    assert jnp.allclose(out2, ref2, atol=1e-2, rtol=1e-2), "tiled-K path mismatch vs reference"

    print("KERNEL_OK")
</pallas_src>

<mosaic_0001>
module attributes {stable_mosaic.version = 11 : i64} {
  func.func @_geglu_ws_kernel(%arg0: i32, %arg1: i32, %arg2: memref<16x32xf32, #tpu.memory_space<vmem>>, %arg3: memref<32x256xf32, #tpu.memory_space<vmem>>, %arg4: memref<1x256xf32, #tpu.memory_space<vmem>>, %arg5: memref<16x128xf32, #tpu.memory_space<vmem>>) attributes {dimension_semantics = [#tpu.dimension_semantics<parallel>, #tpu.dimension_semantics<parallel>], iteration_bounds = array<i64: 1, 1>, scalar_prefetch = 0 : i64, scratch_operands = 0 : i64, tpu.core_type = #tpu.core_type<tc>, window_params = [{transform_indices = @transform_0, window_bounds = array<i64: 16, 32>}, {transform_indices = @transform_1, window_bounds = array<i64: 32, 256>}, {transform_indices = @transform_2, window_bounds = array<i64: 1, 256>}, {transform_indices = @transform_3, window_bounds = array<i64: 16, 128>}]} {
    %c0 = arith.constant 0 : index
    %c0_0 = arith.constant 0 : index
    %0 = vector.load %arg2[%c0, %c0_0] : memref<16x32xf32, #tpu.memory_space<vmem>>, vector<16x32xf32>
    %c0_1 = arith.constant 0 : index
    %c0_2 = arith.constant 0 : index
    %1 = vector.load %arg3[%c0_1, %c0_2] : memref<32x256xf32, #tpu.memory_space<vmem>>, vector<32x256xf32>
    %cst = arith.constant dense<0.000000e+00> : vector<16x256xf32>
    %2 = tpu.matmul %0, %1, %cst {dimension_numbers = #tpu.dot_dimension_numbers<[1], [0], [0], [1], [0, 0, 1, 1], [], []>} : vector<16x32xf32>, vector<32x256xf32>, vector<16x256xf32> -> vector<16x256xf32>
    %c0_3 = arith.constant 0 : index
    %c0_4 = arith.constant 0 : index
    %3 = vector.load %arg4[%c0_3, %c0_4] : memref<1x256xf32, #tpu.memory_space<vmem>>, vector<1x256xf32>
    %4 = vector.broadcast %3 : vector<1x256xf32> to vector<16x256xf32>
    %5 = arith.addf %2, %4 : vector<16x256xf32>
    %6 = vector.extract_strided_slice %5 {offsets = [0, 0], sizes = [16, 128], strides = [1, 1]} : vector<16x256xf32> to vector<16x128xf32>
    %7 = vector.extract_strided_slice %5 {offsets = [0, 128], sizes = [16, 128], strides = [1, 1]} : vector<16x256xf32> to vector<16x128xf32>
    %cst_5 = arith.constant 5.000000e-01 : f32
    %8 = vector.broadcast %cst_5 : f32 to vector<16x128xf32>
    %9 = arith.mulf %8, %7 : vector<16x128xf32>
    %cst_6 = arith.constant 0.707106769 : f32
    %10 = vector.broadcast %cst_6 : f32 to vector<16x128xf32>
    %11 = arith.mulf %7, %10 : vector<16x128xf32>
    %12 = math.erf %11 : vector<16x128xf32>
    %cst_7 = arith.constant 1.000000e+00 : f32
    %13 = vector.broadcast %cst_7 : f32 to vector<16x128xf32>
    %14 = arith.addf %13, %12 : vector<16x128xf32>
    %15 = arith.mulf %9, %14 : vector<16x128xf32>
    %16 = arith.mulf %6, %15 : vector<16x128xf32>
    %c0_8 = arith.constant 0 : index
    %c0_9 = arith.constant 0 : index
    %17 = vector.load %arg5[%c0_8, %c0_9] : memref<16x128xf32, #tpu.memory_space<vmem>>, vector<16x128xf32>
    tpu.vector_store %arg5[%c0_8, %c0_9], %16 {strides = array<i32>} : memref<16x128xf32, #tpu.memory_space<vmem>>, vector<16x128xf32>,
    return
  }
  func.func @transform_0(%arg0: i32, %arg1: i32) -> (i32, i32) {
    %c0_i32 = arith.constant 0 : i32
    %c0_i32_0 = arith.constant 0 : i32
    return %arg1, %c0_i32 : i32, i32
  }
  func.func @transform_1(%arg0: i32, %arg1: i32) -> (i32, i32) {
    %c0_i32 = arith.constant 0 : i32
    %c0_i32_0 = arith.constant 0 : i32
    return %c0_i32, %arg0 : i32, i32
  }
  func.func @transform_2(%arg0: i32, %arg1: i32) -> (i32, i32) {
    %c0_i32 = arith.constant 0 : i32
    %c0_i32_0 = arith.constant 0 : i32
    return %c0_i32, %arg0 : i32, i32
  }
  func.func @transform_3(%arg0: i32, %arg1: i32) -> (i32, i32) {
    %c0_i32 = arith.constant 0 : i32
    return %arg1, %arg0 : i32, i32
  }
}

</mosaic_0001>

<llo_original>
// kernel: geglu.1
$region0: #{geglu.1}
  #allocation0 [shape = 'u32[]', space=smem, size = 0x4, offset = 0x4, fixed_abs, tag = 'smem constant byte address 0x4 - core index']
  #allocation1 [shape = 'u32[72,128]{1,0:T(1,128)}', space=vmem, size = 0x9000, scoped, tag = 'internal scratch']
  %s0 = inlined_call_operand.hbm [shape: f32[16,32], index: 0, kind: input, shape index: {}]
  %s1 = inlined_call_operand.hbm [shape: f32[32,256], index: 1, kind: input, shape index: {}]
  %s2 = inlined_call_operand.vmem [shape: f32[1,256], index: 2, kind: input, shape index: {}]
  %s3 = inlined_call_operand.vmem [shape: f32[16,128], index: 3, kind: output, shape index: {}]
  %s4 = sld [smem:[#allocation0]]
  $region30: #{geglu.1} parent=0
    _
  %s6 = ssub.s32 1, %s4
  %s7 = scalar_select 0, %s6, %s4
  $region1: #{geglu.1} parent=0
    #allocation2 [shape = 'u8[8192]{0}', space=vmem, size = 0x2000, scoped, tag = 'input window, operand 0, single buffered']
    #allocation3 [shape = 's32[1]{0}', space=sflag, size = 0x4, scoped, tag = 'scoped memory for geglu.1']
    #allocation4 [shape = 'u8[32768]{0}', space=vmem, size = 0x8000, scoped, tag = 'input window, operand 1, single buffered']
    #allocation5 [shape = 's32[1]{0}', space=sflag, size = 0x4, scoped, tag = 'scoped memory for geglu.1']
    %8 = vsyncpa [#allocation3], 0
    %9 = vsyncpa [#allocation5], 0
    // Predicated region
    $region2: #{geglu.1} parent=1 // pred_check
      _
    $region3: #{geglu.1} parent=1 // pred_check_branch
      %11 = sbr.rel (0) target = $region5
    $region4: #{geglu.1} parent=1 // pred_region
      %13 = vsyncadd [#allocation3], 0
      %s14 = sshll.u32 %s0, 4
      %s15 = int_to_ptr.hbm [resolvable:$true] %s14
      %s16 = sshll.u32 [#allocation2], 4
      %s17 = int_to_ptr.vmem [resolvable:$true] %s16
      %22 = dma.hbm_to_vmem [thread:$0]  %s15, 256, %s17, [#allocation3], 128, 128, 8
    $region5: #{geglu.1} parent=1 // pred_fallthru
      _
    // Predicated region
    $region6: #{geglu.1} parent=1 // pred_check
      _
    $region7: #{geglu.1} parent=1 // pred_check_branch
      %24 = sbr.rel (0) target = $region9
    $region8: #{geglu.1} parent=1 // pred_region
      %26 = vsyncadd [#allocation5], 0
      %s27 = sshll.u32 %s1, 4
      %s28 = int_to_ptr.hbm [resolvable:$true] %s27
      %s29 = sshll.u32 [#allocation4], 4
      %s30 = int_to_ptr.vmem [resolvable:$true] %s29
      %35 = dma.hbm_to_vmem [thread:$0]  %s28, 1024, %s30, [#allocation5], 256, 256, 16
    $region9: #{geglu.1} parent=1 // pred_fallthru
      _
    // Predicated region
    $region10: #{geglu.1} parent=1 // pred_check
      _
    $region11: #{geglu.1} parent=1 // pred_check_branch
      %37 = sbr.rel (0) target = $region13
    $region12: #{geglu.1} parent=1 // pred_region
      _
    $region13: #{geglu.1} parent=1 // pred_fallthru
      _
    // Predicated region
    $region14: #{geglu.1} parent=1 // pred_check
      _
    $region15: #{geglu.1} parent=1 // pred_check_branch
      %39 = sbr.rel (0) target = $region17
    $region16: #{geglu.1} parent=1 // pred_region
      %41 = dma.done [#allocation3], 256
    $region17: #{geglu.1} parent=1 // pred_fallthru
      _
    // Predicated region
    $region18: #{geglu.1} parent=1 // pred_check
      _
    $region19: #{geglu.1} parent=1 // pred_check_branch
      %43 = sbr.rel (0) target = $region21
    $region20: #{geglu.1} parent=1 // pred_region
      %45 = dma.done [#allocation5], 1024
    $region21: #{geglu.1} parent=1 // pred_fallthru
      _
    %v46 = vld [vmem:[#allocation2] sm:$0xff]
    %v47 = vld [vmem:[#allocation2 + $0x8] sm:$0xff]
    %v48 = vld [vmem:[#allocation4] sm:$0xff]
    %v49 = vld [vmem:[#allocation4 + $0x8] sm:$0xff]
    %v50 = vld [vmem:[#allocation4 + $0x10] sm:$0xff]
    %v51 = vld [vmem:[#allocation4 + $0x18] sm:$0xff]
    %v52 = vld [vmem:[#allocation4 + $0x20] sm:$0xff]
    %v53 = vld [vmem:[#allocation4 + $0x28] sm:$0xff]
    %v54 = vld [vmem:[#allocation4 + $0x30] sm:$0xff]
    %v55 = vld [vmem:[#allocation4 + $0x38] sm:$0xff]
    %v56 = vld [vmem:[%s2] sm:$0x3]
    %v58 = vperm.slane %v56, 0
    %v59 = vperm.slane %v56, 1
    %vm62 = vcmask 261120
    %v64 = vsel %vm62, %v46, 0
    %v67 = vsel %vm62, %v47, 0
    %69 = vmatpush.msra.mxu0 0.0
    %70 = vmatpush.msra.mxu0 0.0
    %71 = vmatpush.msra.mxu0 0.0
    %72 = vmatpush.msra.mxu0 0.0
    %73 = vmatpush.msra.mxu0 0.0
    %74 = vmatpush.msra.mxu0 0.0
    %75 = vmatpush.msra.mxu0 0.0
    %76 = vmatpush.msra.mxu0 0.0
    %77 = vmatpush.msra.mxu0 0.0
    %78 = vmatpush.msra.mxu0 0.0
    %79 = vmatpush.msra.mxu0 0.0
    %80 = vmatpush.msra.mxu0 0.0
    %81 = vmatpush.msra.mxu0 %v54
    %82 = vmatpush.msra.mxu0 %v52
    %83 = vmatpush.msra.mxu0 %v50
    %84 = vmatpush.msra.mxu0 %v48
    %85 = vmatmul.f32.gmra.mxu0 %v64
    %v86 = vpop.f32.mrf.mxu0
    %v87 = vadd.f32 %v58, %v86
    %88 = vmatmul.f32.gmra.mxu0 %v67
    %v89 = vpop.f32.mrf.mxu0
    %v90 = vadd.f32 %v58, %v89
    %91 = vdwg.mxu0
    %92 = vmatpush.msra.mxu0 0.0
    %93 = vmatpush.msra.mxu0 0.0
    %94 = vmatpush.msra.mxu0 0.0
    %95 = vmatpush.msra.mxu0 0.0
    %96 = vmatpush.msra.mxu0 0.0
    %97 = vmatpush.msra.mxu0 0.0
    %98 = vmatpush.msra.mxu0 0.0
    %99 = vmatpush.msra.mxu0 0.0
    %100 = vmatpush.msra.mxu0 0.0
    %101 = vmatpush.msra.mxu0 0.0
    %102 = vmatpush.msra.mxu0 0.0
    %103 = vmatpush.msra.mxu0 0.0
    %104 = vmatpush.msra.mxu0 %v55
    %105 = vmatpush.msra.mxu0 %v53
    %106 = vmatpush.msra.mxu0 %v51
    %107 = vmatpush.msra.mxu0 %v49
    %108 = vmatmul.f32.gmra.mxu0 %v64
    %v109 = vpop.f32.mrf.mxu0
    %v110 = vadd.f32 %v59, %v109
    %111 = vmatmul.f32.gmra.mxu0 %v67
    %v112 = vpop.f32.mrf.mxu0
    %v113 = vadd.f32 %v59, %v112
    %114 = vdwg.mxu0
    %v115 = vmul.f32 %v110, 0.5
    %v116 = vmul.f32 %v113, 0.5
    %v117 = vmul.f32 %v110, 0.70710677
    %v118 = vmul.f32 %v113, 0.70710677
    %v119 = vmul.f32 %v117, %v117
    %v120 = vmin.f32 16.0, %v119
    %v121 = vmul.f32 %v120, 2.1237322e-06
    %v122 = vadd.f32 %v121, 0.00028619796
    %v123 = vmul.f32 %v120, %v122
    %v124 = vadd.f32 %v123, 0.0036580483
    %v125 = vmul.f32 %v120, %v124
    %v126 = vadd.f32 %v125, 0.05243302
    %v127 = vmul.f32 %v120, %v126
    %v128 = vadd.f32 %v127, 0.18741608
    %v129 = vmul.f32 %v120, %v128
    %v130 = vadd.f32 %v129, 1.1283791
    %v131 = vmul.f32 %v117, %v130
    %v132 = vmul.f32 %v120, 3.8918573e-05
    %v133 = vadd.f32 %v132, 0.001143296
    %v134 = vmul.f32 %v120, %v133
    %v135 = vadd.f32 %v134, 0.014752088
    %v136 = vmul.f32 %v120, %v135
    %v137 = vadd.f32 %v136, 0.112945676
    %v138 = vmul.f32 %v120, %v137
    %v139 = vadd.f32 %v138, 0.4994258
    %v140 = vmul.f32 %v120, %v139
    %v141 = vadd.f32 %v140, 1.0
    %v142 = vrcp.pop %v141
    %v143 = vmul.f32 %v141, %v142
    %v144 = vsub.f32 1.0, %v143
    %v145 = vmul.f32 %v142, %v144
    %v146 = vadd.f32 %v142, %v145
    %vm147 = vweird.f32 %v141
    %vm148 = vweird.f32 %v142
    %vm149 = vmor %vm147, %vm148
    %v150 = vsel %vm149, %v142, %v146
    %v151 = vand.u32 2147483647, %v141
    %vm152 = vcmp.eq.f32.partialorder %v151, 8.507059e+37
    %v153 = vand.u32 %v141, 2147483648
    %v154 = vor.u32 1.1754944e-38, %v153
    %v155 = vsel %vm152, %v154, %v150
    %v156 = vmul.f32 %v131, %v155
    %v157 = vmin.f32 %v156, 1.0
    %v158 = vmax.f32 %v157, -1.0
    %v159 = vmul.f32 %v118, %v118
    %v160 = vmin.f32 16.0, %v159
    %v161 = vmul.f32 %v160, 2.1237322e-06
    %v162 = vadd.f32 %v161, 0.00028619796
    %v163 = vmul.f32 %v160, %v162
    %v164 = vadd.f32 %v163, 0.0036580483
    %v165 = vmul.f32 %v160, %v164
    %v166 = vadd.f32 %v165, 0.05243302
    %v167 = vmul.f32 %v160, %v166
    %v168 = vadd.f32 %v167, 0.18741608
    %v169 = vmul.f32 %v160, %v168
    %v170 = vadd.f32 %v169, 1.1283791
    %v171 = vmul.f32 %v118, %v170
    %v172 = vmul.f32 %v160, 3.8918573e-05
    %v173 = vadd.f32 %v172, 0.001143296
    %v174 = vmul.f32 %v160, %v173
    %v175 = vadd.f32 %v174, 0.014752088
    %v176 = vmul.f32 %v160, %v175
    %v177 = vadd.f32 %v176, 0.112945676
    %v178 = vmul.f32 %v160, %v177
    %v179 = vadd.f32 %v178, 0.4994258
    %v180 = vmul.f32 %v160, %v179
    %v181 = vadd.f32 %v180, 1.0
    %v182 = vrcp.pop %v181
    %v183 = vmul.f32 %v181, %v182
    %v184 = vsub.f32 1.0, %v183
    %v185 = vmul.f32 %v182, %v184
    %v186 = vadd.f32 %v182, %v185
    %vm187 = vweird.f32 %v181
    %vm188 = vweird.f32 %v182
    %vm189 = vmor %vm187, %vm188
    %v190 = vsel %vm189, %v182, %v186
    %v191 = vand.u32 2147483647, %v181
    %vm192 = vcmp.eq.f32.partialorder %v191, 8.507059e+37
    %v193 = vand.u32 %v181, 2147483648
    %v194 = vor.u32 1.1754944e-38, %v193
    %v195 = vsel %vm192, %v194, %v190
    %v196 = vmul.f32 %v171, %v195
    %v197 = vmin.f32 %v196, 1.0
    %v198 = vmax.f32 %v197, -1.0
    %v199 = vadd.f32 %v158, 1.0
    %v200 = vadd.f32 %v198, 1.0
    %v201 = vmul.f32 %v115, %v199
    %v202 = vmul.f32 %v116, %v200
    %v203 = vmul.f32 %v87, %v201
    %v204 = vmul.f32 %v90, %v202
    %205 = vst [vmem:[%s3] sm:$0xff] %v203
    %206 = vst [vmem:[%s3 + $0x8] sm:$0xff] %v204
    // Predicated region
    $region22: #{geglu.1} parent=1 // pred_check
      _
    $region23: #{geglu.1} parent=1 // pred_check_branch
      %208 = sbr.rel (0) target = $region25
    $region24: #{geglu.1} parent=1 // pred_region
      _
    $region25: #{geglu.1} parent=1 // pred_fallthru
      _
    // Predicated region
    $region26: #{geglu.1} parent=1 // pred_check
      _
    $region27: #{geglu.1} parent=1 // pred_check_branch
      %210 = sbr.rel (0) target = $region29
    $region28: #{geglu.1} parent=1 // pred_region
      _
    $region29: #{geglu.1} parent=1 // pred_fallthru
      _
    %211 = vsyncpa [#allocation3], 1
    %212 = vsyncpa [#allocation5], 1

</llo_original>
